<compile_context>
chip_gen: v7x
topology: tpu7x:2x2x1
jax: 0.10.0
libtpu: 0.0.40
codegen_flags: <defaults>
</compile_context>

<pallas_src>
import math

import jax
import jax.numpy as jnp
from jax.experimental import pallas as pl
from jax.experimental.pallas import tpu as pltpu


def _round_up(n, m):
    return ((n + m - 1) // m) * m


def _linear_kernel(x_ref, w_ref, b_ref, o_ref):
    # x_ref: (TM, K) tile, w_ref: (K, N) resident, b_ref: (1, N) resident f32,
    # o_ref: (TM, N) tile.  Accumulate in f32 on the MXU, add bias, cast out.
    acc = jnp.dot(x_ref[...], w_ref[...], preferred_element_type=jnp.float32)
    o_ref[...] = (acc + b_ref[...]).astype(o_ref.dtype)


def dummy_front_end(x, weight_t, bias, *, tm=512, compute_dtype=None,
                    out_dtype=None, min_pallas_m=0):
    """Linear layer y = x @ weight_t + bias applied to the last dim of x.

    x: (..., in_dim); weight_t: (in_dim, out_dim) == W^T; bias: (out_dim,).
    compute_dtype: optional matmul-input dtype (e.g. jnp.bfloat16 on v6e/v7x);
    accumulation is always f32.  out_dtype defaults to x.dtype.
    min_pallas_m: below this many rows, fall back to a plain XLA dot (fusable).
    """
    *lead, in_dim = x.shape
    out_dim = weight_t.shape[1]
    if out_dtype is None:
        out_dtype = x.dtype

    M = math.prod(lead) if lead else 1
    x2d = x.reshape(M, in_dim)

    if compute_dtype is not None:
        x2d = x2d.astype(compute_dtype)
        weight_t = weight_t.astype(compute_dtype)

    if M < min_pallas_m:
        # Tiny-M path: let XLA fuse the GEMM with its neighbors.
        y = jnp.dot(x2d, weight_t, preferred_element_type=jnp.float32)
        y = (y + bias.astype(jnp.float32)).astype(out_dtype)
        return y.reshape(*lead, out_dim)

    bias2d = bias.astype(jnp.float32).reshape(1, out_dim)

    in_itemsize = jnp.dtype(x2d.dtype).itemsize
    out_itemsize = jnp.dtype(out_dtype).itemsize
    # Sublane multiple for the compute dtype: 8 (32-bit), 16 (16-bit), 32 (8-bit).
    sub = {4: 8, 2: 16, 1: 32}.get(in_itemsize, 8)

    # Row tile: big enough to amortize per-step overhead, capped so the grid has
    # at least 2 steps whenever M allows (keeps both v7x TensorCores busy).
    tm_eff = max(sub, min(tm, _round_up(pl.cdiv(M, 2), sub)))
    grid = (pl.cdiv(M, tm_eff),)

    cost = pl.CostEstimate(
        flops=2 * M * in_dim * out_dim,
        transcendentals=0,
        bytes_accessed=(M * in_dim * in_itemsize
                        + in_dim * out_dim * in_itemsize
                        + out_dim * 4
                        + M * out_dim * out_itemsize),
    )

    out = pl.pallas_call(
        _linear_kernel,
        out_shape=jax.ShapeDtypeStruct((M, out_dim), out_dtype),
        grid=grid,
        in_specs=[
            pl.BlockSpec((tm_eff, in_dim), lambda i: (i, 0)),     # x: pipelined row tiles
            pl.BlockSpec((in_dim, out_dim), lambda i: (0, 0)),    # W^T: VMEM-resident
            pl.BlockSpec((1, out_dim), lambda i: (0, 0)),         # bias: VMEM-resident
        ],
        out_specs=pl.BlockSpec((tm_eff, out_dim), lambda i: (i, 0)),
        compiler_params=pltpu.CompilerParams(
            dimension_semantics=("parallel",)                     # megacore on v7x
        ),
        cost_estimate=cost,
    )(x2d, weight_t, bias2d)

    return out.reshape(*lead, out_dim)


if __name__ == "__main__":
    INPUT_DIM = 80
    OUTPUT_DIM = 192
    BATCH, SEQ = 2, 8

    key = jax.random.PRNGKey(0)
    kx, kw, kb, kx2 = jax.random.split(key, 4)

    # Deterministic parameter init (matches nn.Linear's uniform(-1/sqrt(in), 1/sqrt(in))).
    bound = 1.0 / (INPUT_DIM ** 0.5)
    # Weight stored pre-transposed: (in_dim, out_dim) == W^T
    weight_t = jax.random.uniform(
        kw, (INPUT_DIM, OUTPUT_DIM), dtype=jnp.float32, minval=-bound, maxval=bound
    )
    bias = jax.random.uniform(
        kb, (OUTPUT_DIM,), dtype=jnp.float32, minval=-bound, maxval=bound
    )

    fwd = jax.jit(
        dummy_front_end,
        static_argnames=("tm", "compute_dtype", "out_dtype", "min_pallas_m"),
    )

    # --- Small shape (the test case): exact f32 nn.Linear semantics. ---
    x = jax.random.normal(kx, (BATCH, SEQ, INPUT_DIM), dtype=jnp.float32)
    y_ref = x @ weight_t + bias
    y = jax.block_until_ready(fwd(x, weight_t, bias))
    assert y.shape == (BATCH, SEQ, OUTPUT_DIM), y.shape
    assert jnp.allclose(y, y_ref, atol=1e-5, rtol=1e-5)

    # --- Larger M: multi-step grid with a partial last block (M=1200, TM=512). ---
    x_big = jax.random.normal(kx2, (4, 300, INPUT_DIM), dtype=jnp.float32)
    y_big_ref = x_big @ weight_t + bias
    y_big = jax.block_until_ready(fwd(x_big, weight_t, bias))
    assert y_big.shape == (4, 300, OUTPUT_DIM), y_big.shape
    assert jnp.allclose(y_big, y_big_ref, atol=1e-5, rtol=1e-5)

    # --- bf16-input path (v6e/v7x byte-reduction lever; f32 accumulation). ---
    y_bf16 = jax.block_until_ready(fwd(x_big, weight_t, bias, compute_dtype=jnp.bfloat16))
    assert y_bf16.shape == (4, 300, OUTPUT_DIM), y_bf16.shape
    assert jnp.allclose(y_bf16, y_big_ref, atol=5e-2, rtol=5e-2)

    print("KERNEL_OK")
</pallas_src>

<mosaic_0001>
module attributes {stable_mosaic.version = 11 : i64} {
  func.func @_linear_kernel(%arg0: i32, %arg1: memref<8x80xf32, #tpu.memory_space<vmem>>, %arg2: memref<80x192xf32, #tpu.memory_space<vmem>>, %arg3: memref<1x192xf32, #tpu.memory_space<vmem>>, %arg4: memref<8x192xf32, #tpu.memory_space<vmem>>) attributes {dimension_semantics = [#tpu.dimension_semantics<parallel>], iteration_bounds = array<i64: 2>, scalar_prefetch = 0 : i64, scratch_operands = 0 : i64, tpu.core_type = #tpu.core_type<tc>, window_params = [{transform_indices = @transform_0, window_bounds = array<i64: 8, 80>}, {pipeline_mode = #tpu.pipeline_mode<synchronous>, transform_indices = @transform_1, window_bounds = array<i64: 80, 192>}, {pipeline_mode = #tpu.pipeline_mode<synchronous>, transform_indices = @transform_2, window_bounds = array<i64: 1, 192>}, {transform_indices = @transform_3, window_bounds = array<i64: 8, 192>}]} {
    %c0 = arith.constant 0 : index
    %c0_0 = arith.constant 0 : index
    %0 = vector.load %arg1[%c0, %c0_0] : memref<8x80xf32, #tpu.memory_space<vmem>>, vector<8x80xf32>
    %c0_1 = arith.constant 0 : index
    %c0_2 = arith.constant 0 : index
    %1 = vector.load %arg2[%c0_1, %c0_2] : memref<80x192xf32, #tpu.memory_space<vmem>>, vector<80x192xf32>
    %cst = arith.constant dense<0.000000e+00> : vector<8x192xf32>
    %2 = tpu.matmul %0, %1, %cst {dimension_numbers = #tpu.dot_dimension_numbers<[1], [0], [0], [1], [0, 0, 1, 1], [], []>} : vector<8x80xf32>, vector<80x192xf32>, vector<8x192xf32> -> vector<8x192xf32>
    %c0_3 = arith.constant 0 : index
    %c0_4 = arith.constant 0 : index
    %3 = vector.load %arg3[%c0_3, %c0_4] : memref<1x192xf32, #tpu.memory_space<vmem>>, vector<1x192xf32>
    %4 = vector.broadcast %3 : vector<1x192xf32> to vector<8x192xf32>
    %5 = arith.addf %2, %4 : vector<8x192xf32>
    %c0_5 = arith.constant 0 : index
    %c0_6 = arith.constant 0 : index
    %6 = vector.load %arg4[%c0_5, %c0_6] : memref<8x192xf32, #tpu.memory_space<vmem>>, vector<8x192xf32>
    tpu.vector_store %arg4[%c0_5, %c0_6], %5 {strides = array<i32>} : memref<8x192xf32, #tpu.memory_space<vmem>>, vector<8x192xf32>,
    return
  }
  func.func @transform_0(%arg0: i32) -> (i32, i32) {
    %c0_i32 = arith.constant 0 : i32
    %c0_i32_0 = arith.constant 0 : i32
    return %arg0, %c0_i32 : i32, i32
  }
  func.func @transform_1(%arg0: i32) -> (i32, i32) {
    %c0_i32 = arith.constant 0 : i32
    %c0_i32_0 = arith.constant 0 : i32
    %c0_i32_1 = arith.constant 0 : i32
    return %c0_i32, %c0_i32_0 : i32, i32
  }
  func.func @transform_2(%arg0: i32) -> (i32, i32) {
    %c0_i32 = arith.constant 0 : i32
    %c0_i32_0 = arith.constant 0 : i32
    %c0_i32_1 = arith.constant 0 : i32
    return %c0_i32, %c0_i32_0 : i32, i32
  }
  func.func @transform_3(%arg0: i32) -> (i32, i32) {
    %c0_i32 = arith.constant 0 : i32
    %c0_i32_0 = arith.constant 0 : i32
    return %arg0, %c0_i32 : i32, i32
  }
}

</mosaic_0001>

<llo_original>
// kernel: dummy_front_end.1
$region0: #{dummy_front_end.1}
  #allocation0 [shape = 'u32[]', space=smem, size = 0x4, offset = 0x4, fixed_abs, tag = 'smem constant byte address 0x4 - core index']
  #allocation1 [shape = 'u32[144,128]{1,0:T(1,128)}', space=vmem, size = 0x12000, scoped, tag = 'internal scratch']
  %s0 = inlined_call_operand.hbm [shape: f32[16,80], index: 0, kind: input, shape index: {}]
  %s1 = inlined_call_operand.hbm [shape: f32[80,192], index: 1, kind: input, shape index: {}]
  %s2 = inlined_call_operand.vmem [shape: f32[1,192], index: 2, kind: input, shape index: {}]
  %s3 = inlined_call_operand.hbm [shape: f32[16,192], index: 3, kind: output, shape index: {}]
  %s4 = sld [smem:[#allocation0]]
  $region53: #{dummy_front_end.1} parent=0
    _
  %s6 = ssub.s32 1, %s4
  %s7 = scalar_select 0, %s6, %s4
  $region1: #{dummy_front_end.1} parent=0
    #allocation2 [shape = 'u8[8192]{0}', space=vmem, size = 0x2000, scoped, tag = 'input window, operand 0']
    #allocation3 [shape = 's32[2]{0}', space=sflag, size = 0x8, scoped, tag = 'scoped memory for dummy_front_end.1']
    #allocation4 [shape = 's32[2]{0}', space=sflag, size = 0x8, scoped, tag = 'scoped memory for dummy_front_end.1']
    #allocation5 [shape = 'u8[81920]{0}', space=vmem, size = 0x14000, scoped, tag = 'input window, operand 1, single buffered']
    #allocation6 [shape = 's32[1]{0}', space=sflag, size = 0x4, scoped, tag = 'scoped memory for dummy_front_end.1']
    #allocation7 [shape = 'u8[16384]{0}', space=vmem, size = 0x4000, scoped, tag = 'output window, operand 0']
    %8 = vsyncpa [#allocation3], 0
    %s9 = scalar_lea.sflag [#allocation3], 1
    %10 = vsyncpa %s9, 0
    %11 = vsyncpa [#allocation6], 0
    %12 = vsyncpa [#allocation4], 0
    %s13 = scalar_lea.sflag [#allocation4], 1
    %14 = vsyncpa %s13, 0
    loop: start=0, step=1, limit=4
    $region2: #{dummy_front_end.1} parent=1 // loop_pre_header
      _
    $region3: #{dummy_front_end.1} parent=1 // loop_header
      %s16 = sphi 0, %s20
      %p17 = scmp.ge.s32.totalorder %s16, 4
      %s26 = sphi 0, %s28
      %s29 = sphi 0, %s26
      %s30 = sphi 0, %s29
      %s46 = sphi 0, %s30
      %s50 = sphi 0, %s50
      %s52 = sphi 0, %s50
      %s53 = sphi 0, %s52
      %s67 = sphi 0, %s53
      %s71 = sphi 0, %s71
      %s73 = sphi 0, %s71
      %s74 = sphi 0, %s73
      %s88 = sphi 0, %s74
      %s94 = sphi 0, %s96
      %s97 = sphi 0, %s94
      %s98 = sphi 0, %s97
      %s114 = sphi 0, %s98
    $region4: #{dummy_front_end.1} parent=1 // loop_header_branch
      %19 = sbr.rel (%p17) target = $region8
    $region5: #{dummy_front_end.1} parent=1 // loop_body
      %s21 = ssub.s32 %s16, 1
      %s22 = ssub.s32 %s16, 2
      %s23 = sadd.s32 %s16, 1
      %s24 = ssub.s32 %s16, %s23
      %p25 = scmp.eq.s32.totalorder %s24, 0
      %s27 = sadd.s32 %s26, 1
      %s28 = scalar_select %p25, %s26, %s27
      %p31 = pneg %p25
      %p32 = scmp.eq.s32.totalorder %s16, 1
      %p33 = por %p31, %p32
      %p34 = scmp.ne.s32.totalorder %s26, %s29
      %p35 = scmp.eq.s32.totalorder %s16, 0
      %p36 = por %p34, %p35
      %p37 = scmp.ne.s32.totalorder %s26, %s29
      %p38 = scmp.eq.s32.totalorder %s21, 1
      %p39 = por %p37, %p38
      %p40 = scmp.ne.s32.totalorder %s29, %s30
      %p41 = scmp.eq.s32.totalorder %s21, 0
      %p42 = por %p40, %p41
      %p43 = scmp.ne.s32.totalorder %s29, %s30
      %p44 = scmp.eq.s32.totalorder %s22, 1
      %p45 = por %p43, %p44
      %p47 = scmp.ne.s32.totalorder %s30, %s46
      %p48 = scmp.eq.s32.totalorder %s22, 0
      %p49 = por %p47, %p48
      %s51 = sadd.s32 %s50, 1
      %p54 = scmp.eq.s32.totalorder %s16, 1
      %p55 = scmp.ne.s32.totalorder %s50, %s52
      %p56 = scmp.eq.s32.totalorder %s16, 0
      %p57 = por %p55, %p56
      %p58 = scmp.ne.s32.totalorder %s50, %s52
      %p59 = scmp.eq.s32.totalorder %s21, 1
      %p60 = por %p58, %p59
      %p61 = scmp.ne.s32.totalorder %s52, %s53
      %p62 = scmp.eq.s32.totalorder %s21, 0
      %p63 = por %p61, %p62
      %p64 = scmp.ne.s32.totalorder %s52, %s53
      %p65 = scmp.eq.s32.totalorder %s22, 1
      %p66 = por %p64, %p65
      %p68 = scmp.ne.s32.totalorder %s53, %s67
      %p69 = scmp.eq.s32.totalorder %s22, 0
      %p70 = por %p68, %p69
      %s72 = sadd.s32 %s71, 1
      %p75 = scmp.eq.s32.totalorder %s16, 1
      %p76 = scmp.ne.s32.totalorder %s71, %s73
      %p77 = scmp.eq.s32.totalorder %s16, 0
      %p78 = por %p76, %p77
      %p79 = scmp.ne.s32.totalorder %s71, %s73
      %p80 = scmp.eq.s32.totalorder %s21, 1
      %p81 = por %p79, %p80
      %p82 = scmp.ne.s32.totalorder %s73, %s74
      %p83 = scmp.eq.s32.totalorder %s21, 0
      %p84 = por %p82, %p83
      %p85 = scmp.ne.s32.totalorder %s73, %s74
      %p86 = scmp.eq.s32.totalorder %s22, 1
      %p87 = por %p85, %p86
      %p89 = scmp.ne.s32.totalorder %s74, %s88
      %p90 = scmp.eq.s32.totalorder %s22, 0
      %p91 = por %p89, %p90
      %s92 = ssub.s32 %s16, %s23
      %p93 = scmp.eq.s32.totalorder %s92, 0
      %s95 = sadd.s32 %s94, 1
      %s96 = scalar_select %p93, %s94, %s95
      %p99 = pneg %p93
      %p100 = scmp.eq.s32.totalorder %s16, 1
      %p101 = por %p99, %p100
      %p102 = scmp.ne.s32.totalorder %s94, %s97
      %p103 = scmp.eq.s32.totalorder %s16, 0
      %p104 = por %p102, %p103
      %p105 = scmp.ne.s32.totalorder %s94, %s97
      %p106 = scmp.eq.s32.totalorder %s21, 1
      %p107 = por %p105, %p106
      %p108 = scmp.ne.s32.totalorder %s97, %s98
      %p109 = scmp.eq.s32.totalorder %s21, 0
      %p110 = por %p108, %p109
      %p111 = scmp.ne.s32.totalorder %s97, %s98
      %p112 = scmp.eq.s32.totalorder %s22, 1
      %p113 = por %p111, %p112
      %p115 = scmp.ne.s32.totalorder %s98, %s114
      %p116 = scmp.eq.s32.totalorder %s22, 0
      %p117 = por %p115, %p116
      %p118 = scmp.le.s32.totalorder 1, %s16
      %p119 = scmp.lt.s32.totalorder %s16, 3
      %p120 = pnand %p118, %p119
      %p121 = pneg %p120
      // Predicated region
      $region9: #{dummy_front_end.1} parent=5 // pred_check
        _
      $region10: #{dummy_front_end.1} parent=5 // pred_check_branch
        %123 = sbr.rel (%p120) target = $region12
      $region11: #{dummy_front_end.1} parent=5 // pred_region
        %s124 = ssub.s32 %s16, 1
        // Predicated region
        $region13: #{dummy_front_end.1} parent=11 // pred_check
          %p125 = pneg %p63
        $region14: #{dummy_front_end.1} parent=11 // pred_check_branch
          %127 = sbr.rel (%p125) target = $region16
        $region15: #{dummy_front_end.1} parent=11 // pred_region
          %s129 = ssub.s32 2560, 2560
          %130 = vsyncadd [#allocation6], %s129
          %s131 = sshll.u32 [#allocation5], 4
          %s132 = int_to_ptr.vmem [resolvable:$true] %s131
          %137 = dma.hbm_to_vmem [thread:$0]  %s1, 2560, %s132, [#allocation6], 256, 256, 16
        $region16: #{dummy_front_end.1} parent=11 // pred_fallthru
          _
        // Predicated region
        $region17: #{dummy_front_end.1} parent=11 // pred_check
          %p138 = pneg %p84
        $region18: #{dummy_front_end.1} parent=11 // pred_check_branch
          %140 = sbr.rel (%p138) target = $region20
        $region19: #{dummy_front_end.1} parent=11 // pred_region
          _
        $region20: #{dummy_front_end.1} parent=11 // pred_fallthru
          _
      $region12: #{dummy_front_end.1} parent=5 // pred_fallthru
        _
      %p141 = scmp.lt.s32.totalorder %s16, 2
      // Predicated region
      $region21: #{dummy_front_end.1} parent=5 // pred_check
        %p142 = pneg %p141
      $region22: #{dummy_front_end.1} parent=5 // pred_check_branch
        %144 = sbr.rel (%p142) target = $region24
      $region23: #{dummy_front_end.1} parent=5 // pred_region
        // Predicated region
        $region25: #{dummy_front_end.1} parent=23 // pred_check
          %p145 = pneg %p36
        $region26: #{dummy_front_end.1} parent=23 // pred_check_branch
          %147 = sbr.rel (%p145) target = $region28
        $region27: #{dummy_front_end.1} parent=23 // pred_region
          %s148 = sand.u32 %s26, 1
          %s149 = scalar_lea.sflag [#allocation3], %s148
          %s150 = sand.u32 %s26, 1
          %s151 = smul.addr %s150, 8
          %s152 = scalar_lea.vmem [#allocation2], %s151
          %s154 = ssub.s32 128, 128
          %155 = vsyncadd %s149, %s154
          %s156 = smul.addr %s16, 128
          %s157 = scalar_lea.hbm %s0, %s156
          %s159 = sshll.u32 %s152, 4
          %s160 = int_to_ptr.vmem [resolvable:$true] %s159
          %162 = dma.hbm_to_vmem [thread:$0]  %s157, 128, %s160, %s149
        $region28: #{dummy_front_end.1} parent=23 // pred_fallthru
          _
      $region24: #{dummy_front_end.1} parent=5 // pred_fallthru
        _
      %p163 = scmp.le.s32.totalorder 1, %s16
      %p164 = scmp.lt.s32.totalorder %s16, 3
      %p165 = pnand %p163, %p164
      %p166 = pneg %p165
      // Predicated region
      $region29: #{dummy_front_end.1} parent=5 // pred_check
        _
      $region30: #{dummy_front_end.1} parent=5 // pred_check_branch
        %168 = sbr.rel (%p165) target = $region32
      $region31: #{dummy_front_end.1} parent=5 // pred_region
        %s169 = ssub.s32 %s16, 1
        %s170 = sand.u32 %s29, 1
        %s171 = scalar_lea.sflag [#allocation3], %s170
        %s172 = sand.u32 %s29, 1
        %s173 = smul.addr %s172, 8
        %s174 = scalar_lea.vmem [#allocation2], %s173
        // Predicated region
        $region33: #{dummy_front_end.1} parent=31 // pred_check
          %p175 = pneg %p42
        $region34: #{dummy_front_end.1} parent=31 // pred_check_branch
          %177 = sbr.rel (%p175) target = $region36
        $region35: #{dummy_front_end.1} parent=31 // pred_region
          %178 = dma.done %s171, 128
        $region36: #{dummy_front_end.1} parent=31 // pred_fallthru
          _
        // Predicated region
        $region37: #{dummy_front_end.1} parent=31 // pred_check
          %p179 = pneg %p63
        $region38: #{dummy_front_end.1} parent=31 // pred_check_branch
          %181 = sbr.rel (%p179) target = $region40
        $region39: #{dummy_front_end.1} parent=31 // pred_region
          %182 = dma.done [#allocation6], 2560
        $region40: #{dummy_front_end.1} parent=31 // pred_fallthru
          _
        %s183 = sand.u32 %s29, 1
        %s184 = scalar_lea.sflag [#allocation3], %s183
        %s185 = sand.u32 %s29, 1
        %s186 = smul.addr %s185, 8
        %s187 = scalar_lea.vmem [#allocation2], %s186
        %p188 = pneg %p42
        %p189 = pneg %p39
        %p190 = pneg %p63
        %p191 = pneg %p60
        %p192 = pneg %p84
        %p193 = pneg %p81
        %p194 = pneg %p110
        %p195 = pneg %p107
        %s196 = sand.u32 %s97, 1
        %s197 = scalar_lea.sflag [#allocation4], %s196
        %s198 = sand.u32 %s97, 1
        %s199 = smul.addr %s198, 16
        %s200 = scalar_lea.vmem [#allocation7], %s199
        %v201 = vld [vmem:[%s174] sm:$0xff]
        %v202 = vld [vmem:[#allocation5] sm:$0xff]
        %v203 = vld [vmem:[#allocation5 + $0x8] sm:$0xff]
        %v204 = vld [vmem:[#allocation5 + $0x10] sm:$0xff]
        %v205 = vld [vmem:[#allocation5 + $0x18] sm:$0xff]
        %v206 = vld [vmem:[#allocation5 + $0x20] sm:$0xff]
        %v207 = vld [vmem:[#allocation5 + $0x28] sm:$0xff]
        %v208 = vld [vmem:[#allocation5 + $0x30] sm:$0xff]
        %v209 = vld [vmem:[#allocation5 + $0x38] sm:$0xff]
        %v210 = vld [vmem:[#allocation5 + $0x40] sm:$0xff]
        %v211 = vld [vmem:[#allocation5 + $0x48] sm:$0xff]
        %v212 = vld [vmem:[#allocation5 + $0x50] sm:$0xff]
        %v213 = vld [vmem:[#allocation5 + $0x58] sm:$0xff]
        %v214 = vld [vmem:[#allocation5 + $0x60] sm:$0xff]
        %v215 = vld [vmem:[#allocation5 + $0x68] sm:$0xff]
        %v216 = vld [vmem:[#allocation5 + $0x70] sm:$0xff]
        %v217 = vld [vmem:[#allocation5 + $0x78] sm:$0xff]
        %v218 = vld [vmem:[#allocation5 + $0x80] sm:$0xff]
        %v219 = vld [vmem:[#allocation5 + $0x88] sm:$0xff]
        %v220 = vld [vmem:[#allocation5 + $0x90] sm:$0xff]
        %v221 = vld [vmem:[#allocation5 + $0x98] sm:$0xff]
        %v222 = vld [vmem:[%s2] sm:$0x3]
        %v224 = vlaneseq
        %v225 = vshrl.u32 %v224, 7
        %v226 = vsub.s32 0, %v225
        %v227 = vrot.slane %v222, %v226
        %v228 = vlaneseq
        %v229 = vshrl.u32 %v228, 7
        %v230 = vsub.s32 1, %v229
        %v231 = vrot.slane %v222, %v230
        %vm234 = vcmask 654336
        %v236 = vsel %vm234, %v201, 0
        %238 = vmatprep.subr.mxu0 %v203
        %239 = vmatpush1.msra.mxu0 %v202
        %240 = vmatprep.subr.mxu0 %v205
        %241 = vmatpush1.msra.mxu0 %v204
        %242 = vmatprep.subr.mxu0 %v207
        %243 = vmatpush1.msra.mxu0 %v206
        %244 = vmatprep.subr.mxu0 %v209
        %245 = vmatpush1.msra.mxu0 %v208
        %246 = vmatprep.subr.mxu0 %v211
        %247 = vmatpush1.msra.mxu0 %v210
        %248 = vmatprep.subr.mxu0 %v213
        %249 = vmatpush1.msra.mxu0 %v212
        %250 = vmatprep.subr.mxu0 %v215
        %251 = vmatpush1.msra.mxu0 %v214
        %252 = vmatprep.subr.mxu0 %v217
        %253 = vmatpush1.msra.mxu0 %v216
        %254 = vmatprep.subr.mxu0 %v219
        %255 = vmatpush1.msra.mxu0 %v218
        %256 = vmatprep.subr.mxu0 %v221
        %257 = vmatpush1.msra.mxu0 %v220
        %258 = vmatprep.subr.mxu0 0.0
        %259 = vmatpush1.msra.mxu0 0.0
        %260 = vmatprep.subr.mxu0 0.0
        %261 = vmatpush1.msra.mxu0 0.0
        %262 = vmatprep.subr.mxu0 0.0
        %263 = vmatpush1.msra.mxu0 0.0
        %264 = vmatprep.subr.mxu0 0.0
        %265 = vmatpush1.msra.mxu0 0.0
        %266 = vmatprep.subr.mxu0 0.0
        %267 = vmatpush1.msra.mxu0 0.0
        %268 = vmatprep.subr.mxu0 0.0
        %269 = vmatpush1.msra.mxu0 0.0
        %270 = vmatprep.subr.mxu0 0.0
        %271 = vmatpush1.msra.mxu0 0.0
        %272 = vmatprep.subr.mxu0 0.0
        %273 = vmatpush1.msra.mxu0 0.0
        %274 = vmatprep.subr.mxu0 0.0
        %275 = vmatpush1.msra.mxu0 0.0
        %276 = vmatprep.subr.mxu0 0.0
        %277 = vmatpush1.msra.mxu0 0.0
        %278 = vmatprep.subr.mxu0 0.0
        %279 = vmatpush1.msra.mxu0 0.0
        %280 = vmatprep.subr.mxu0 0.0
        %281 = vmatpush1.msra.mxu0 0.0
        %282 = vmatprep.subr.mxu0 0.0
        %283 = vmatpush1.msra.mxu0 0.0
        %284 = vmatprep.subr.mxu0 0.0
        %285 = vmatpush1.msra.mxu0 0.0
        %286 = vmatprep.subr.mxu0 0.0
        %287 = vmatpush1.msra.mxu0 0.0
        %288 = vmatprep.subr.mxu0 0.0
        %289 = vmatpush1.msra.mxu0 0.0
        %290 = vmatprep.subr.mxu0 0.0
        %291 = vmatpush1.msra.mxu0 0.0
        %292 = vmatprep.subr.mxu0 0.0
        %293 = vmatpush1.msra.mxu0 0.0
        %294 = vmatprep.subr.mxu0 0.0
        %295 = vmatpush1.msra.mxu0 0.0
        %296 = vmatprep.subr.mxu0 0.0
        %297 = vmatpush1.msra.mxu0 0.0
        %298 = vmatprep.subr.mxu0 0.0
        %299 = vmatpush1.msra.mxu0 0.0
        %300 = vmatprep.subr.mxu0 0.0
        %301 = vmatpush1.msra.mxu0 0.0
        %302 = vmatprep.mubr.f32.mxu0 0.0
        %303 = vmatmul.mubr.f32.gmra.mrb[0].mxu0 %v236
        %v304 = vpop.f32.mrb[0].mxu0
        %v305 = vadd.f32 %v227, %v304
        %v306 = vpop.f32.mrb[0].mxu0
        %v307 = vadd.f32 %v231, %v306
        %308 = vdwg.mxu0
        %309 = vst [vmem:[%s200] sm:$0xff] %v305
        %vm310 = vcmask 523264
        %311 = vst.msk [vmem:[%s200 + $0x8] sm:$0xff] %vm310, %v307
        %s312 = sand.u32 %s97, 1
        %s313 = scalar_lea.sflag [#allocation4], %s312
        %s314 = sand.u32 %s97, 1
        %s315 = smul.addr %s314, 16
        %s316 = scalar_lea.vmem [#allocation7], %s315
        // Predicated region
        $region41: #{dummy_front_end.1} parent=31 // pred_check
          %p317 = pneg %p107
        $region42: #{dummy_front_end.1} parent=31 // pred_check_branch
          %319 = sbr.rel (%p317) target = $region44
        $region43: #{dummy_front_end.1} parent=31 // pred_region
          %s321 = ssub.s32 256, 256
          %322 = vsyncadd %s313, %s321
          %s323 = smul.addr %s21, 2
          %s324 = smul.addr %s323, 128
          %s325 = scalar_lea.hbm %s3, %s324
          %s327 = sshll.u32 %s316, 4
          %s328 = int_to_ptr.vmem [resolvable:$true] %s327
          %330 = dma.vmem_to_hbm [thread:$0]  %s328, 256, %s325, %s313
        $region44: #{dummy_front_end.1} parent=31 // pred_fallthru
          _
      $region32: #{dummy_front_end.1} parent=5 // pred_fallthru
        _
      %p331 = scmp.le.s32.totalorder 2, %s16
      // Predicated region
      $region45: #{dummy_front_end.1} parent=5 // pred_check
        %p332 = pneg %p331
      $region46: #{dummy_front_end.1} parent=5 // pred_check_branch
        %334 = sbr.rel (%p332) target = $region48
      $region47: #{dummy_front_end.1} parent=5 // pred_region
        %s335 = ssub.s32 %s16, 2
        // Predicated region
        $region49: #{dummy_front_end.1} parent=47 // pred_check
          %p336 = pneg %p113
        $region50: #{dummy_front_end.1} parent=47 // pred_check_branch
          %338 = sbr.rel (%p336) target = $region52
        $region51: #{dummy_front_end.1} parent=47 // pred_region
          %s339 = sand.u32 %s98, 1
          %s340 = scalar_lea.sflag [#allocation4], %s339
          %s341 = sand.u32 %s98, 1
          %s342 = smul.addr %s341, 16
          %s343 = scalar_lea.vmem [#allocation7], %s342
          %344 = dma.done %s340, 256
        $region52: #{dummy_front_end.1} parent=47 // pred_fallthru
          _
      $region48: #{dummy_front_end.1} parent=5 // pred_fallthru
        _
    $region6: #{dummy_front_end.1} parent=1 // loop_footer
      %s20 = sadd.s32 1, %s16
    $region7: #{dummy_front_end.1} parent=1 // loop_footer_branch
      %15 = sbr.rel target = $region3
    $region8: #{dummy_front_end.1} parent=1 // loop_exit
      _
    %345 = vsyncpa [#allocation3], 1
    %s346 = scalar_lea.sflag [#allocation3], 1
    %347 = vsyncpa %s346, 1
    %348 = vsyncpa [#allocation6], 1
    %349 = vsyncpa [#allocation4], 1
    %s350 = scalar_lea.sflag [#allocation4], 1
    %351 = vsyncpa %s350, 1

</llo_original>
